<compile_context>
chip_gen: v5e
topology: v5e:2x2
jax: 0.10.0
libtpu: 0.0.40
codegen_flags: <defaults>
</compile_context>

<pallas_src>
import jax
import jax.numpy as jnp
from jax.experimental import pallas as pl
from jax.experimental.pallas import tpu as pltpu


def _round_up(n, m):
    return ((n + m - 1) // m) * m


def _resblock_kernel(x_ref, w1_ref, b1_ref, w2_ref, b2_ref, o_ref):
    x = x_ref[...]

    # Linear 1 + ReLU (dropout = identity in eval mode).
    # Operands hit the MXU in their native dtype; accumulation is f32.
    h = jnp.dot(x, w1_ref[...], preferred_element_type=jnp.float32)
    h = jnp.maximum(h + b1_ref[...].astype(jnp.float32), 0.0)

    # Linear 2 + ReLU (dropout = identity in eval mode).
    h = jnp.dot(h.astype(w2_ref.dtype), w2_ref[...],
                preferred_element_type=jnp.float32)
    h = jnp.maximum(h + b2_ref[...].astype(jnp.float32), 0.0)

    # Residual add in f32, single cast on store.
    o_ref[...] = (x.astype(jnp.float32) + h).astype(o_ref.dtype)


def prepare_resblock_params(w1, b1, w2, b2):
    """One-time parameter prep: transpose PyTorch [out, in] weights to
    [in, out] and reshape biases to 2-D so they land cleanly in VMEM.
    Do this once at setup, NOT per forward call."""
    F = w1.shape[0]
    return (jnp.transpose(w1), b1.reshape(1, F),
            jnp.transpose(w2), b2.reshape(1, F))


def residual_block(x, params, *, block_rows=256):
    """x: [B, F]; params: output of prepare_resblock_params."""
    w1_t, b1_2d, w2_t, b2_2d = params
    B, F = x.shape
    assert w1_t.shape == (F, F) and w2_t.shape == (F, F)

    # Sublane packing: bf16 rows pack in pairs -> row tiles must be a
    # multiple of 16 for bf16, 8 for f32.
    pack = 16 if x.dtype == jnp.bfloat16 else 8

    # Keep >= 2 grid steps when the batch allows it (v7x shards the
    # "parallel" axis across its 2 TensorCores); otherwise just cover B.
    if B >= 2 * pack:
        block_rows = max(pack, min(block_rows, _round_up(-(-B // 2), pack)))
    else:
        block_rows = _round_up(max(B, 1), pack)

    # Pad the batch instead of requiring block_rows | B; padded rows are
    # computed and discarded, so block_rows can be chosen purely for perf.
    B_pad = _round_up(B, block_rows)
    x_in = x if B_pad == B else jnp.pad(x, ((0, B_pad - B), (0, 0)))

    grid = (B_pad // block_rows,)

    # VMEM budget: single-buffered weights + biases, double-buffered x/out
    # row tiles, plus headroom.
    io_item = jnp.dtype(x.dtype).itemsize
    w_item = jnp.dtype(w1_t.dtype).itemsize
    weight_bytes = 2 * F * F * w_item + 2 * F * w_item      # W1^T, W2^T, b1, b2
    io_bytes = 2 * 2 * block_rows * F * io_item             # 2x in + 2x out bufs
    vmem_limit = min(int(1.5 * (weight_bytes + io_bytes)) + (4 << 20), 96 << 20)

    resident = dict(pipeline_mode=pl.Buffered(1))            # constant index_map

    out = pl.pallas_call(
        _resblock_kernel,
        out_shape=jax.ShapeDtypeStruct((B_pad, F), x.dtype),
        grid_spec=pltpu.PrefetchScalarGridSpec(
            num_scalar_prefetch=0,
            grid=grid,
            in_specs=[
                pl.BlockSpec((block_rows, F), lambda i: (i, 0)),      # x rows
                pl.BlockSpec((F, F), lambda i: (0, 0), **resident),   # W1^T
                pl.BlockSpec((1, F), lambda i: (0, 0), **resident),   # b1
                pl.BlockSpec((F, F), lambda i: (0, 0), **resident),   # W2^T
                pl.BlockSpec((1, F), lambda i: (0, 0), **resident),   # b2
            ],
            out_specs=pl.BlockSpec((block_rows, F), lambda i: (i, 0)),
        ),
        compiler_params=pltpu.CompilerParams(
            dimension_semantics=("parallel",),
            vmem_limit_bytes=vmem_limit,
        ),
    )(x_in, w1_t, b1_2d, w2_t, b2_2d)

    return out if B_pad == B else out[:B]


def _reference(x, w1, b1, w2, b2):
    h = jnp.maximum(x @ w1.T + b1, 0.0)
    h = jnp.maximum(h @ w2.T + b2, 0.0)
    return x + h


if __name__ == "__main__":
    # Batch deliberately NOT a multiple of the row tile -> exercises padding.
    B, F = 100, 128

    key = jax.random.PRNGKey(0)
    kx, k1, kb1, k2, kb2 = jax.random.split(key, 5)

    # Deterministic synthetic parameters (PyTorch nn.Linear: W [out,in], b [out]).
    bound = 1.0 / (F ** 0.5)
    x = jax.random.normal(kx, (B, F), dtype=jnp.float32)
    w1 = jax.random.uniform(k1, (F, F), minval=-bound, maxval=bound, dtype=jnp.float32)
    b1 = jax.random.uniform(kb1, (F,), minval=-bound, maxval=bound, dtype=jnp.float32)
    w2 = jax.random.uniform(k2, (F, F), minval=-bound, maxval=bound, dtype=jnp.float32)
    b2 = jax.random.uniform(kb2, (F,), minval=-bound, maxval=bound, dtype=jnp.float32)

    # One-time parameter preparation (transposes happen here, not per call).
    params = prepare_resblock_params(w1, b1, w2, b2)

    out = residual_block(x, params)
    out = jax.block_until_ready(out)

    ref = _reference(x, w1, b1, w2, b2)
    assert out.shape == (B, F)
    assert jnp.allclose(out, ref, atol=1e-4, rtol=1e-4)

    print("KERNEL_OK")
</pallas_src>

<mosaic_0001>
module attributes {stable_mosaic.version = 11 : i64} {
  func.func @_resblock_kernel(%arg0: i32, %arg1: memref<56x128xf32, #tpu.memory_space<vmem>>, %arg2: memref<128x128xf32, #tpu.memory_space<vmem>>, %arg3: memref<1x128xf32, #tpu.memory_space<vmem>>, %arg4: memref<128x128xf32, #tpu.memory_space<vmem>>, %arg5: memref<1x128xf32, #tpu.memory_space<vmem>>, %arg6: memref<56x128xf32, #tpu.memory_space<vmem>>) attributes {dimension_semantics = [#tpu.dimension_semantics<parallel>], iteration_bounds = array<i64: 2>, scalar_prefetch = 0 : i64, scratch_operands = 0 : i64, tpu.core_type = #tpu.core_type<tc>, window_params = [{transform_indices = @transform_0, window_bounds = array<i64: 56, 128>}, {pipeline_mode = #tpu.pipeline_mode<synchronous>, transform_indices = @transform_1, window_bounds = array<i64: 128, 128>}, {pipeline_mode = #tpu.pipeline_mode<synchronous>, transform_indices = @transform_2, window_bounds = array<i64: 1, 128>}, {pipeline_mode = #tpu.pipeline_mode<synchronous>, transform_indices = @transform_3, window_bounds = array<i64: 128, 128>}, {pipeline_mode = #tpu.pipeline_mode<synchronous>, transform_indices = @transform_4, window_bounds = array<i64: 1, 128>}, {transform_indices = @transform_5, window_bounds = array<i64: 56, 128>}]} {
    %c0 = arith.constant 0 : index
    %c0_0 = arith.constant 0 : index
    %0 = vector.load %arg1[%c0, %c0_0] : memref<56x128xf32, #tpu.memory_space<vmem>>, vector<56x128xf32>
    %c0_1 = arith.constant 0 : index
    %c0_2 = arith.constant 0 : index
    %1 = vector.load %arg2[%c0_1, %c0_2] : memref<128x128xf32, #tpu.memory_space<vmem>>, vector<128x128xf32>
    %cst = arith.constant dense<0.000000e+00> : vector<56x128xf32>
    %2 = tpu.matmul %0, %1, %cst {dimension_numbers = #tpu.dot_dimension_numbers<[1], [0], [0], [1], [0, 0, 1, 1], [], []>} : vector<56x128xf32>, vector<128x128xf32>, vector<56x128xf32> -> vector<56x128xf32>
    %c0_3 = arith.constant 0 : index
    %c0_4 = arith.constant 0 : index
    %3 = vector.load %arg3[%c0_3, %c0_4] : memref<1x128xf32, #tpu.memory_space<vmem>>, vector<1x128xf32>
    %4 = vector.broadcast %3 : vector<1x128xf32> to vector<56x128xf32>
    %5 = arith.addf %2, %4 : vector<56x128xf32>
    %cst_5 = arith.constant 0.000000e+00 : f32
    %6 = vector.broadcast %cst_5 : f32 to vector<56x128xf32>
    %7 = arith.maximumf %5, %6 : vector<56x128xf32>
    %c0_6 = arith.constant 0 : index
    %c0_7 = arith.constant 0 : index
    %8 = vector.load %arg4[%c0_6, %c0_7] : memref<128x128xf32, #tpu.memory_space<vmem>>, vector<128x128xf32>
    %cst_8 = arith.constant dense<0.000000e+00> : vector<56x128xf32>
    %9 = tpu.matmul %7, %8, %cst_8 {dimension_numbers = #tpu.dot_dimension_numbers<[1], [0], [0], [1], [0, 0, 1, 1], [], []>} : vector<56x128xf32>, vector<128x128xf32>, vector<56x128xf32> -> vector<56x128xf32>
    %c0_9 = arith.constant 0 : index
    %c0_10 = arith.constant 0 : index
    %10 = vector.load %arg5[%c0_9, %c0_10] : memref<1x128xf32, #tpu.memory_space<vmem>>, vector<1x128xf32>
    %11 = vector.broadcast %10 : vector<1x128xf32> to vector<56x128xf32>
    %12 = arith.addf %9, %11 : vector<56x128xf32>
    %cst_11 = arith.constant 0.000000e+00 : f32
    %13 = vector.broadcast %cst_11 : f32 to vector<56x128xf32>
    %14 = arith.maximumf %12, %13 : vector<56x128xf32>
    %15 = arith.addf %0, %14 : vector<56x128xf32>
    %c0_12 = arith.constant 0 : index
    %c0_13 = arith.constant 0 : index
    %16 = vector.load %arg6[%c0_12, %c0_13] : memref<56x128xf32, #tpu.memory_space<vmem>>, vector<56x128xf32>
    tpu.vector_store %arg6[%c0_12, %c0_13], %15 {strides = array<i32>} : memref<56x128xf32, #tpu.memory_space<vmem>>, vector<56x128xf32>,
    return
  }
  func.func @transform_0(%arg0: i32) -> (i32, i32) {
    %c0_i32 = arith.constant 0 : i32
    %c0_i32_0 = arith.constant 0 : i32
    return %arg0, %c0_i32 : i32, i32
  }
  func.func @transform_1(%arg0: i32) -> (i32, i32) {
    %c0_i32 = arith.constant 0 : i32
    %c0_i32_0 = arith.constant 0 : i32
    %c0_i32_1 = arith.constant 0 : i32
    return %c0_i32, %c0_i32_0 : i32, i32
  }
  func.func @transform_2(%arg0: i32) -> (i32, i32) {
    %c0_i32 = arith.constant 0 : i32
    %c0_i32_0 = arith.constant 0 : i32
    %c0_i32_1 = arith.constant 0 : i32
    return %c0_i32, %c0_i32_0 : i32, i32
  }
  func.func @transform_3(%arg0: i32) -> (i32, i32) {
    %c0_i32 = arith.constant 0 : i32
    %c0_i32_0 = arith.constant 0 : i32
    %c0_i32_1 = arith.constant 0 : i32
    return %c0_i32, %c0_i32_0 : i32, i32
  }
  func.func @transform_4(%arg0: i32) -> (i32, i32) {
    %c0_i32 = arith.constant 0 : i32
    %c0_i32_0 = arith.constant 0 : i32
    %c0_i32_1 = arith.constant 0 : i32
    return %c0_i32, %c0_i32_0 : i32, i32
  }
  func.func @transform_5(%arg0: i32) -> (i32, i32) {
    %c0_i32 = arith.constant 0 : i32
    %c0_i32_0 = arith.constant 0 : i32
    return %arg0, %c0_i32 : i32, i32
  }
}

</mosaic_0001>

<llo_original>
// kernel: tpu_custom_call.1
$region0: #{tpu_custom_call.1}
  #allocation0 [shape = 'u32[]', space=smem, size = 0x4, offset = 0x4, fixed_abs, tag = 'smem constant byte address 0x4 - core index']
  #allocation1 [shape = 'u32[72,128]{1,0:T(1,128)}', space=vmem, size = 0x9000, scoped, tag = 'internal scratch']
  %s0 = inlined_call_operand.hbm [shape: f32[112,128], index: 0, kind: input, shape index: {}]
  %s1 = inlined_call_operand.hbm [shape: f32[128,128], index: 1, kind: input, shape index: {}]
  %s2 = inlined_call_operand.vmem [shape: f32[1,128], index: 2, kind: input, shape index: {}]
  %s3 = inlined_call_operand.hbm [shape: f32[128,128], index: 3, kind: input, shape index: {}]
  %s4 = inlined_call_operand.vmem [shape: f32[1,128], index: 4, kind: input, shape index: {}]
  %s5 = inlined_call_operand.hbm [shape: f32[112,128], index: 5, kind: output, shape index: {}]
  %s6 = sld [smem:[#allocation0]]
  $region65: #{tpu_custom_call.1} parent=0
    _
  %s8 = ssub.s32 1, %s6
  %s9 = scalar_select 0, %s8, %s6
  $region1: #{tpu_custom_call.1} parent=0
    #allocation2 [shape = 'u8[57344]{0}', space=vmem, size = 0xe000, scoped, tag = 'input window, operand 0']
    #allocation3 [shape = 's32[2]{0}', space=sflag, size = 0x8, scoped, tag = 'scoped memory for tpu_custom_call.1']
    #allocation4 [shape = 's32[2]{0}', space=sflag, size = 0x8, scoped, tag = 'scoped memory for tpu_custom_call.1']
    #allocation5 [shape = 'u8[65536]{0}', space=vmem, size = 0x10000, scoped, tag = 'input window, operand 1, single buffered']
    #allocation6 [shape = 's32[1]{0}', space=sflag, size = 0x4, scoped, tag = 'scoped memory for tpu_custom_call.1']
    #allocation7 [shape = 'u8[65536]{0}', space=vmem, size = 0x10000, scoped, tag = 'input window, operand 3, single buffered']
    #allocation8 [shape = 'u8[57344]{0}', space=vmem, size = 0xe000, scoped, tag = 'output window, operand 0']
    %10 = vsyncpa [#allocation3], 0
    %s11 = scalar_lea.sflag [#allocation3], 1
    %12 = vsyncpa %s11, 0
    %13 = vsyncpa [#allocation6], 0
    %14 = vsyncpa [#allocation4], 0
    %s15 = scalar_lea.sflag [#allocation4], 1
    %16 = vsyncpa %s15, 0
    loop: start=0, step=1, limit=4
    $region2: #{tpu_custom_call.1} parent=1 // loop_pre_header
      _
    $region3: #{tpu_custom_call.1} parent=1 // loop_header
      %s18 = sphi 0, %s22
      %p19 = scmp.ge.s32.totalorder %s18, 4
      %s28 = sphi 0, %s30
      %s31 = sphi 0, %s28
      %s32 = sphi 0, %s31
      %s48 = sphi 0, %s32
      %s52 = sphi 0, %s52
      %s54 = sphi 0, %s52
      %s55 = sphi 0, %s54
      %s69 = sphi 0, %s55
      %s73 = sphi 0, %s73
      %s75 = sphi 0, %s73
      %s76 = sphi 0, %s75
      %s90 = sphi 0, %s76
      %s94 = sphi 0, %s94
      %s96 = sphi 0, %s94
      %s97 = sphi 0, %s96
      %s111 = sphi 0, %s97
      %s115 = sphi 0, %s115
      %s117 = sphi 0, %s115
      %s118 = sphi 0, %s117
      %s132 = sphi 0, %s118
      %s138 = sphi 0, %s140
      %s141 = sphi 0, %s138
      %s142 = sphi 0, %s141
      %s158 = sphi 0, %s142
    $region4: #{tpu_custom_call.1} parent=1 // loop_header_branch
      %21 = sbr.rel (%p19) target = $region8
    $region5: #{tpu_custom_call.1} parent=1 // loop_body
      %s23 = ssub.s32 %s18, 1
      %s24 = ssub.s32 %s18, 2
      %s25 = sadd.s32 %s18, 1
      %s26 = ssub.s32 %s18, %s25
      %p27 = scmp.eq.s32.totalorder %s26, 0
      %s29 = sadd.s32 %s28, 1
      %s30 = scalar_select %p27, %s28, %s29
      %p33 = pneg %p27
      %p34 = scmp.eq.s32.totalorder %s18, 1
      %p35 = por %p33, %p34
      %p36 = scmp.ne.s32.totalorder %s28, %s31
      %p37 = scmp.eq.s32.totalorder %s18, 0
      %p38 = por %p36, %p37
      %p39 = scmp.ne.s32.totalorder %s28, %s31
      %p40 = scmp.eq.s32.totalorder %s23, 1
      %p41 = por %p39, %p40
      %p42 = scmp.ne.s32.totalorder %s31, %s32
      %p43 = scmp.eq.s32.totalorder %s23, 0
      %p44 = por %p42, %p43
      %p45 = scmp.ne.s32.totalorder %s31, %s32
      %p46 = scmp.eq.s32.totalorder %s24, 1
      %p47 = por %p45, %p46
      %p49 = scmp.ne.s32.totalorder %s32, %s48
      %p50 = scmp.eq.s32.totalorder %s24, 0
      %p51 = por %p49, %p50
      %s53 = sadd.s32 %s52, 1
      %p56 = scmp.eq.s32.totalorder %s18, 1
      %p57 = scmp.ne.s32.totalorder %s52, %s54
      %p58 = scmp.eq.s32.totalorder %s18, 0
      %p59 = por %p57, %p58
      %p60 = scmp.ne.s32.totalorder %s52, %s54
      %p61 = scmp.eq.s32.totalorder %s23, 1
      %p62 = por %p60, %p61
      %p63 = scmp.ne.s32.totalorder %s54, %s55
      %p64 = scmp.eq.s32.totalorder %s23, 0
      %p65 = por %p63, %p64
      %p66 = scmp.ne.s32.totalorder %s54, %s55
      %p67 = scmp.eq.s32.totalorder %s24, 1
      %p68 = por %p66, %p67
      %p70 = scmp.ne.s32.totalorder %s55, %s69
      %p71 = scmp.eq.s32.totalorder %s24, 0
      %p72 = por %p70, %p71
      %s74 = sadd.s32 %s73, 1
      %p77 = scmp.eq.s32.totalorder %s18, 1
      %p78 = scmp.ne.s32.totalorder %s73, %s75
      %p79 = scmp.eq.s32.totalorder %s18, 0
      %p80 = por %p78, %p79
      %p81 = scmp.ne.s32.totalorder %s73, %s75
      %p82 = scmp.eq.s32.totalorder %s23, 1
      %p83 = por %p81, %p82
      %p84 = scmp.ne.s32.totalorder %s75, %s76
      %p85 = scmp.eq.s32.totalorder %s23, 0
      %p86 = por %p84, %p85
      %p87 = scmp.ne.s32.totalorder %s75, %s76
      %p88 = scmp.eq.s32.totalorder %s24, 1
      %p89 = por %p87, %p88
      %p91 = scmp.ne.s32.totalorder %s76, %s90
      %p92 = scmp.eq.s32.totalorder %s24, 0
      %p93 = por %p91, %p92
      %s95 = sadd.s32 %s94, 1
      %p98 = scmp.eq.s32.totalorder %s18, 1
      %p99 = scmp.ne.s32.totalorder %s94, %s96
      %p100 = scmp.eq.s32.totalorder %s18, 0
      %p101 = por %p99, %p100
      %p102 = scmp.ne.s32.totalorder %s94, %s96
      %p103 = scmp.eq.s32.totalorder %s23, 1
      %p104 = por %p102, %p103
      %p105 = scmp.ne.s32.totalorder %s96, %s97
      %p106 = scmp.eq.s32.totalorder %s23, 0
      %p107 = por %p105, %p106
      %p108 = scmp.ne.s32.totalorder %s96, %s97
      %p109 = scmp.eq.s32.totalorder %s24, 1
      %p110 = por %p108, %p109
      %p112 = scmp.ne.s32.totalorder %s97, %s111
      %p113 = scmp.eq.s32.totalorder %s24, 0
      %p114 = por %p112, %p113
      %s116 = sadd.s32 %s115, 1
      %p119 = scmp.eq.s32.totalorder %s18, 1
      %p120 = scmp.ne.s32.totalorder %s115, %s117
      %p121 = scmp.eq.s32.totalorder %s18, 0
      %p122 = por %p120, %p121
      %p123 = scmp.ne.s32.totalorder %s115, %s117
      %p124 = scmp.eq.s32.totalorder %s23, 1
      %p125 = por %p123, %p124
      %p126 = scmp.ne.s32.totalorder %s117, %s118
      %p127 = scmp.eq.s32.totalorder %s23, 0
      %p128 = por %p126, %p127
      %p129 = scmp.ne.s32.totalorder %s117, %s118
      %p130 = scmp.eq.s32.totalorder %s24, 1
      %p131 = por %p129, %p130
      %p133 = scmp.ne.s32.totalorder %s118, %s132
      %p134 = scmp.eq.s32.totalorder %s24, 0
      %p135 = por %p133, %p134
      %s136 = ssub.s32 %s18, %s25
      %p137 = scmp.eq.s32.totalorder %s136, 0
      %s139 = sadd.s32 %s138, 1
      %s140 = scalar_select %p137, %s138, %s139
      %p143 = pneg %p137
      %p144 = scmp.eq.s32.totalorder %s18, 1
      %p145 = por %p143, %p144
      %p146 = scmp.ne.s32.totalorder %s138, %s141
      %p147 = scmp.eq.s32.totalorder %s18, 0
      %p148 = por %p146, %p147
      %p149 = scmp.ne.s32.totalorder %s138, %s141
      %p150 = scmp.eq.s32.totalorder %s23, 1
      %p151 = por %p149, %p150
      %p152 = scmp.ne.s32.totalorder %s141, %s142
      %p153 = scmp.eq.s32.totalorder %s23, 0
      %p154 = por %p152, %p153
      %p155 = scmp.ne.s32.totalorder %s141, %s142
      %p156 = scmp.eq.s32.totalorder %s24, 1
      %p157 = por %p155, %p156
      %p159 = scmp.ne.s32.totalorder %s142, %s158
      %p160 = scmp.eq.s32.totalorder %s24, 0
      %p161 = por %p159, %p160
      %p162 = scmp.le.s32.totalorder 1, %s18
      %p163 = scmp.lt.s32.totalorder %s18, 3
      %p164 = pnand %p162, %p163
      %p165 = pneg %p164
      // Predicated region
      $region9: #{tpu_custom_call.1} parent=5 // pred_check
        _
      $region10: #{tpu_custom_call.1} parent=5 // pred_check_branch
        %167 = sbr.rel (%p164) target = $region12
      $region11: #{tpu_custom_call.1} parent=5 // pred_region
        %s168 = ssub.s32 %s18, 1
        // Predicated region
        $region13: #{tpu_custom_call.1} parent=11 // pred_check
          %p169 = pneg %p65
        $region14: #{tpu_custom_call.1} parent=11 // pred_check_branch
          %171 = sbr.rel (%p169) target = $region16
        $region15: #{tpu_custom_call.1} parent=11 // pred_region
          %173 = vsyncadd [#allocation6], 0
          %s174 = sshll.u32 %s1, 4
          %s175 = int_to_ptr.hbm [resolvable:$true] %s174
          %s176 = sshll.u32 [#allocation5], 4
          %s177 = int_to_ptr.vmem [resolvable:$true] %s176
          %182 = dma.hbm_to_vmem [thread:$0]  %s175, 2048, %s177, [#allocation6], 128, 128, 8
        $region16: #{tpu_custom_call.1} parent=11 // pred_fallthru
          _
        // Predicated region
        $region17: #{tpu_custom_call.1} parent=11 // pred_check
          %p183 = pneg %p86
        $region18: #{tpu_custom_call.1} parent=11 // pred_check_branch
          %185 = sbr.rel (%p183) target = $region20
        $region19: #{tpu_custom_call.1} parent=11 // pred_region
          _
        $region20: #{tpu_custom_call.1} parent=11 // pred_fallthru
          _
        // Predicated region
        $region21: #{tpu_custom_call.1} parent=11 // pred_check
          %p186 = pneg %p107
        $region22: #{tpu_custom_call.1} parent=11 // pred_check_branch
          %188 = sbr.rel (%p186) target = $region24
        $region23: #{tpu_custom_call.1} parent=11 // pred_region
          %190 = vsyncadd [#allocation6], 0
          %s191 = sshll.u32 %s3, 4
          %s192 = int_to_ptr.hbm [resolvable:$true] %s191
          %s193 = sshll.u32 [#allocation7], 4
          %s194 = int_to_ptr.vmem [resolvable:$true] %s193
          %199 = dma.hbm_to_vmem [thread:$0]  %s192, 2048, %s194, [#allocation6], 128, 128, 8
        $region24: #{tpu_custom_call.1} parent=11 // pred_fallthru
          _
        // Predicated region
        $region25: #{tpu_custom_call.1} parent=11 // pred_check
          %p200 = pneg %p128
        $region26: #{tpu_custom_call.1} parent=11 // pred_check_branch
          %202 = sbr.rel (%p200) target = $region28
        $region27: #{tpu_custom_call.1} parent=11 // pred_region
          _
        $region28: #{tpu_custom_call.1} parent=11 // pred_fallthru
          _
      $region12: #{tpu_custom_call.1} parent=5 // pred_fallthru
        _
      %p203 = scmp.lt.s32.totalorder %s18, 2
      // Predicated region
      $region29: #{tpu_custom_call.1} parent=5 // pred_check
        %p204 = pneg %p203
      $region30: #{tpu_custom_call.1} parent=5 // pred_check_branch
        %206 = sbr.rel (%p204) target = $region32
      $region31: #{tpu_custom_call.1} parent=5 // pred_region
        // Predicated region
        $region33: #{tpu_custom_call.1} parent=31 // pred_check
          %p207 = pneg %p38
        $region34: #{tpu_custom_call.1} parent=31 // pred_check_branch
          %209 = sbr.rel (%p207) target = $region36
        $region35: #{tpu_custom_call.1} parent=31 // pred_region
          %s210 = sand.u32 %s28, 1
          %s211 = scalar_lea.sflag [#allocation3], %s210
          %s212 = sand.u32 %s28, 1
          %s213 = smul.addr %s212, 56
          %s214 = scalar_lea.vmem [#allocation2], %s213
          %s215 = smul.u32 7, %s18
          %217 = vsyncadd %s211, 0
          %s218 = smul.addr %s215, 8
          %s219 = scalar_lea.hbm %s0, %s218
          %s220 = sshll.u32 %s219, 4
          %s221 = int_to_ptr.hbm [resolvable:$true] %s220
          %s222 = sshll.u32 %s214, 4
          %s223 = int_to_ptr.vmem [resolvable:$true] %s222
          %228 = dma.hbm_to_vmem [thread:$0]  %s221, 896, %s223, %s211, 128, 128, 8
        $region36: #{tpu_custom_call.1} parent=31 // pred_fallthru
          _
      $region32: #{tpu_custom_call.1} parent=5 // pred_fallthru
        _
      %p229 = scmp.le.s32.totalorder 1, %s18
      %p230 = scmp.lt.s32.totalorder %s18, 3
      %p231 = pnand %p229, %p230
      %p232 = pneg %p231
      // Predicated region
      $region37: #{tpu_custom_call.1} parent=5 // pred_check
        _
      $region38: #{tpu_custom_call.1} parent=5 // pred_check_branch
        %234 = sbr.rel (%p231) target = $region40
      $region39: #{tpu_custom_call.1} parent=5 // pred_region
        %s235 = ssub.s32 %s18, 1
        %s236 = sand.u32 %s31, 1
        %s237 = scalar_lea.sflag [#allocation3], %s236
        %s238 = sand.u32 %s31, 1
        %s239 = smul.addr %s238, 56
        %s240 = scalar_lea.vmem [#allocation2], %s239
        // Predicated region
        $region41: #{tpu_custom_call.1} parent=39 // pred_check
          %p241 = pneg %p44
        $region42: #{tpu_custom_call.1} parent=39 // pred_check_branch
          %243 = sbr.rel (%p241) target = $region44
        $region43: #{tpu_custom_call.1} parent=39 // pred_region
          %245 = dma.done %s237, 896
        $region44: #{tpu_custom_call.1} parent=39 // pred_fallthru
          _
        // Predicated region
        $region45: #{tpu_custom_call.1} parent=39 // pred_check
          %p246 = pneg %p65
        $region46: #{tpu_custom_call.1} parent=39 // pred_check_branch
          %248 = sbr.rel (%p246) target = $region48
        $region47: #{tpu_custom_call.1} parent=39 // pred_region
          %250 = dma.done [#allocation6], 2048
        $region48: #{tpu_custom_call.1} parent=39 // pred_fallthru
          _
        // Predicated region
        $region49: #{tpu_custom_call.1} parent=39 // pred_check
          %p251 = pneg %p107
        $region50: #{tpu_custom_call.1} parent=39 // pred_check_branch
          %253 = sbr.rel (%p251) target = $region52
        $region51: #{tpu_custom_call.1} parent=39 // pred_region
          %255 = dma.done [#allocation6], 2048
        $region52: #{tpu_custom_call.1} parent=39 // pred_fallthru
          _
        %s256 = sand.u32 %s31, 1
        %s257 = scalar_lea.sflag [#allocation3], %s256
        %s258 = sand.u32 %s31, 1
        %s259 = smul.addr %s258, 56
        %s260 = scalar_lea.vmem [#allocation2], %s259
        %p261 = pneg %p44
        %p262 = pneg %p41
        %p263 = pneg %p65
        %p264 = pneg %p62
        %p265 = pneg %p86
        %p266 = pneg %p83
        %p267 = pneg %p107
        %p268 = pneg %p104
        %p269 = pneg %p128
        %p270 = pneg %p125
        %p271 = pneg %p154
        %p272 = pneg %p151
        %s273 = sand.u32 %s141, 1
        %s274 = scalar_lea.sflag [#allocation4], %s273
        %s275 = sand.u32 %s141, 1
        %s276 = smul.addr %s275, 56
        %s277 = scalar_lea.vmem [#allocation8], %s276
        %s278 = smul.u32 7, %s23
        %s279 = smul.u32 7, %s23
        %v280 = vld [vmem:[%s240] sm:$0xff]
        %v281 = vld [vmem:[%s240 + $0x8] sm:$0xff]
        %v282 = vld [vmem:[%s240 + $0x10] sm:$0xff]
        %v283 = vld [vmem:[%s240 + $0x18] sm:$0xff]
        %v284 = vld [vmem:[%s240 + $0x20] sm:$0xff]
        %v285 = vld [vmem:[%s240 + $0x28] sm:$0xff]
        %v286 = vld [vmem:[%s240 + $0x30] sm:$0xff]
        %v287 = vld [vmem:[#allocation5] sm:$0xff]
        %v288 = vld [vmem:[#allocation5 + $0x8] sm:$0xff]
        %v289 = vld [vmem:[#allocation5 + $0x10] sm:$0xff]
        %v290 = vld [vmem:[#allocation5 + $0x18] sm:$0xff]
        %v291 = vld [vmem:[#allocation5 + $0x20] sm:$0xff]
        %v292 = vld [vmem:[#allocation5 + $0x28] sm:$0xff]
        %v293 = vld [vmem:[#allocation5 + $0x30] sm:$0xff]
        %v294 = vld [vmem:[#allocation5 + $0x38] sm:$0xff]
        %v295 = vld [vmem:[#allocation5 + $0x40] sm:$0xff]
        %v296 = vld [vmem:[#allocation5 + $0x48] sm:$0xff]
        %v297 = vld [vmem:[#allocation5 + $0x50] sm:$0xff]
        %v298 = vld [vmem:[#allocation5 + $0x58] sm:$0xff]
        %v299 = vld [vmem:[#allocation5 + $0x60] sm:$0xff]
        %v300 = vld [vmem:[#allocation5 + $0x68] sm:$0xff]
        %v301 = vld [vmem:[#allocation5 + $0x70] sm:$0xff]
        %v302 = vld [vmem:[#allocation5 + $0x78] sm:$0xff]
        %v303 = vld [vmem:[%s2] sm:$0x1]
        %v305 = vperm.slane %v303, 0
        %307 = vmatpush.msra.mxu0 %v302
        %308 = vmatpush.msra.mxu0 %v301
        %309 = vmatpush.msra.mxu0 %v300
        %310 = vmatpush.msra.mxu0 %v299
        %311 = vmatpush.msra.mxu0 %v298
        %312 = vmatpush.msra.mxu0 %v297
        %313 = vmatpush.msra.mxu0 %v296
        %314 = vmatpush.msra.mxu0 %v295
        %315 = vmatpush.msra.mxu0 %v294
        %316 = vmatpush.msra.mxu0 %v293
        %317 = vmatpush.msra.mxu0 %v292
        %318 = vmatpush.msra.mxu0 %v291
        %319 = vmatpush.msra.mxu0 %v290
        %320 = vmatpush.msra.mxu0 %v289
        %321 = vmatpush.msra.mxu0 %v288
        %322 = vmatpush.msra.mxu0 %v287
        %323 = vmatmul.f32.gmra.mxu0 %v280
        %v324 = vpop.f32.mrf.mxu0
        %v325 = vadd.f32 %v305, %v324
        %326 = vmatmul.f32.gmra.mxu0 %v281
        %v327 = vpop.f32.mrf.mxu0
        %v328 = vadd.f32 %v305, %v327
        %329 = vmatmul.f32.gmra.mxu0 %v282
        %v330 = vpop.f32.mrf.mxu0
        %v331 = vadd.f32 %v305, %v330
        %332 = vmatmul.f32.gmra.mxu0 %v283
        %v333 = vpop.f32.mrf.mxu0
        %v334 = vadd.f32 %v305, %v333
        %335 = vmatmul.f32.gmra.mxu0 %v284
        %v336 = vpop.f32.mrf.mxu0
        %v337 = vadd.f32 %v305, %v336
        %338 = vmatmul.f32.gmra.mxu0 %v285
        %v339 = vpop.f32.mrf.mxu0
        %v340 = vadd.f32 %v305, %v339
        %341 = vmatmul.f32.gmra.mxu0 %v286
        %v342 = vpop.f32.mrf.mxu0
        %v343 = vadd.f32 %v305, %v342
        %344 = vdwg.mxu0
        %v345 = vmax.f32 %v325, 0.0
        %v346 = vmax.f32 %v328, 0.0
        %v347 = vmax.f32 %v331, 0.0
        %v348 = vmax.f32 %v334, 0.0
        %v349 = vmax.f32 %v337, 0.0
        %v350 = vmax.f32 %v340, 0.0
        %v351 = vmax.f32 %v343, 0.0
        %v352 = vld [vmem:[#allocation7] sm:$0xff]
        %v353 = vld [vmem:[#allocation7 + $0x8] sm:$0xff]
        %v354 = vld [vmem:[#allocation7 + $0x10] sm:$0xff]
        %v355 = vld [vmem:[#allocation7 + $0x18] sm:$0xff]
        %v356 = vld [vmem:[#allocation7 + $0x20] sm:$0xff]
        %v357 = vld [vmem:[#allocation7 + $0x28] sm:$0xff]
        %v358 = vld [vmem:[#allocation7 + $0x30] sm:$0xff]
        %v359 = vld [vmem:[#allocation7 + $0x38] sm:$0xff]
        %v360 = vld [vmem:[#allocation7 + $0x40] sm:$0xff]
        %v361 = vld [vmem:[#allocation7 + $0x48] sm:$0xff]
        %v362 = vld [vmem:[#allocation7 + $0x50] sm:$0xff]
        %v363 = vld [vmem:[#allocation7 + $0x58] sm:$0xff]
        %v364 = vld [vmem:[#allocation7 + $0x60] sm:$0xff]
        %v365 = vld [vmem:[#allocation7 + $0x68] sm:$0xff]
        %v366 = vld [vmem:[#allocation7 + $0x70] sm:$0xff]
        %v367 = vld [vmem:[#allocation7 + $0x78] sm:$0xff]
        %v368 = vld [vmem:[%s4] sm:$0x1]
        %v370 = vperm.slane %v368, 0
        %372 = vmatpush.msra.mxu0 %v367
        %373 = vmatpush.msra.mxu0 %v366
        %374 = vmatpush.msra.mxu0 %v365
        %375 = vmatpush.msra.mxu0 %v364
        %376 = vmatpush.msra.mxu0 %v363
        %377 = vmatpush.msra.mxu0 %v362
        %378 = vmatpush.msra.mxu0 %v361
        %379 = vmatpush.msra.mxu0 %v360
        %380 = vmatpush.msra.mxu0 %v359
        %381 = vmatpush.msra.mxu0 %v358
        %382 = vmatpush.msra.mxu0 %v357
        %383 = vmatpush.msra.mxu0 %v356
        %384 = vmatpush.msra.mxu0 %v355
        %385 = vmatpush.msra.mxu0 %v354
        %386 = vmatpush.msra.mxu0 %v353
        %387 = vmatpush.msra.mxu0 %v352
        %388 = vmatmul.f32.gmra.mxu0 %v345
        %v389 = vpop.f32.mrf.mxu0
        %v390 = vadd.f32 %v370, %v389
        %391 = vmatmul.f32.gmra.mxu0 %v346
        %v392 = vpop.f32.mrf.mxu0
        %v393 = vadd.f32 %v370, %v392
        %394 = vmatmul.f32.gmra.mxu0 %v347
        %v395 = vpop.f32.mrf.mxu0
        %v396 = vadd.f32 %v370, %v395
        %397 = vmatmul.f32.gmra.mxu0 %v348
        %v398 = vpop.f32.mrf.mxu0
        %v399 = vadd.f32 %v370, %v398
        %400 = vmatmul.f32.gmra.mxu0 %v349
        %v401 = vpop.f32.mrf.mxu0
        %v402 = vadd.f32 %v370, %v401
        %403 = vmatmul.f32.gmra.mxu0 %v350
        %v404 = vpop.f32.mrf.mxu0
        %v405 = vadd.f32 %v370, %v404
        %406 = vmatmul.f32.gmra.mxu0 %v351
        %v407 = vpop.f32.mrf.mxu0
        %v408 = vadd.f32 %v370, %v407
        %409 = vdwg.mxu0
        %v410 = vmax.f32 %v390, 0.0
        %v411 = vmax.f32 %v393, 0.0
        %v412 = vmax.f32 %v396, 0.0
        %v413 = vmax.f32 %v399, 0.0
        %v414 = vmax.f32 %v402, 0.0
        %v415 = vmax.f32 %v405, 0.0
        %v416 = vmax.f32 %v408, 0.0
        %v417 = vadd.f32 %v280, %v410
        %v418 = vadd.f32 %v281, %v411
        %v419 = vadd.f32 %v282, %v412
        %v420 = vadd.f32 %v283, %v413
        %v421 = vadd.f32 %v284, %v414
        %v422 = vadd.f32 %v285, %v415
        %v423 = vadd.f32 %v286, %v416
        %424 = vst [vmem:[%s277] sm:$0xff] %v417
        %425 = vst [vmem:[%s277 + $0x8] sm:$0xff] %v418
        %426 = vst [vmem:[%s277 + $0x10] sm:$0xff] %v419
        %427 = vst [vmem:[%s277 + $0x18] sm:$0xff] %v420
        %428 = vst [vmem:[%s277 + $0x20] sm:$0xff] %v421
        %429 = vst [vmem:[%s277 + $0x28] sm:$0xff] %v422
        %430 = vst [vmem:[%s277 + $0x30] sm:$0xff] %v423
        %s431 = sand.u32 %s141, 1
        %s432 = scalar_lea.sflag [#allocation4], %s431
        %s433 = sand.u32 %s141, 1
        %s434 = smul.addr %s433, 56
        %s435 = scalar_lea.vmem [#allocation8], %s434
        // Predicated region
        $region53: #{tpu_custom_call.1} parent=39 // pred_check
          %p436 = pneg %p151
        $region54: #{tpu_custom_call.1} parent=39 // pred_check_branch
          %438 = sbr.rel (%p436) target = $region56
        $region55: #{tpu_custom_call.1} parent=39 // pred_region
          %s439 = smul.u32 7, %s23
          %441 = vsyncadd %s432, 0
          %s442 = smul.addr %s439, 8
          %s443 = scalar_lea.hbm %s5, %s442
          %s444 = sshll.u32 %s435, 4
          %s445 = int_to_ptr.vmem [resolvable:$true] %s444
          %s446 = sshll.u32 %s443, 4
          %s447 = int_to_ptr.hbm [resolvable:$true] %s446
          %452 = dma.vmem_to_hbm [thread:$0]  %s445, 896, %s447, %s432, 128, 128, 8
        $region56: #{tpu_custom_call.1} parent=39 // pred_fallthru
          _
      $region40: #{tpu_custom_call.1} parent=5 // pred_fallthru
        _
      %p453 = scmp.le.s32.totalorder 2, %s18
      // Predicated region
      $region57: #{tpu_custom_call.1} parent=5 // pred_check
        %p454 = pneg %p453
      $region58: #{tpu_custom_call.1} parent=5 // pred_check_branch
        %456 = sbr.rel (%p454) target = $region60
      $region59: #{tpu_custom_call.1} parent=5 // pred_region
        %s457 = ssub.s32 %s18, 2
        // Predicated region
        $region61: #{tpu_custom_call.1} parent=59 // pred_check
          %p458 = pneg %p157
        $region62: #{tpu_custom_call.1} parent=59 // pred_check_branch
          %460 = sbr.rel (%p458) target = $region64
        $region63: #{tpu_custom_call.1} parent=59 // pred_region
          %s461 = sand.u32 %s142, 1
          %s462 = scalar_lea.sflag [#allocation4], %s461
          %s463 = sand.u32 %s142, 1
          %s464 = smul.addr %s463, 56
          %s465 = scalar_lea.vmem [#allocation8], %s464
          %467 = dma.done %s462, 896
        $region64: #{tpu_custom_call.1} parent=59 // pred_fallthru
          _
      $region60: #{tpu_custom_call.1} parent=5 // pred_fallthru
        _
    $region6: #{tpu_custom_call.1} parent=1 // loop_footer
      %s22 = sadd.s32 1, %s18
    $region7: #{tpu_custom_call.1} parent=1 // loop_footer_branch
      %17 = sbr.rel target = $region3
    $region8: #{tpu_custom_call.1} parent=1 // loop_exit
      _
    %468 = vsyncpa [#allocation3], 1
    %s469 = scalar_lea.sflag [#allocation3], 1
    %470 = vsyncpa %s469, 1
    %471 = vsyncpa [#allocation6], 1
    %472 = vsyncpa [#allocation4], 1
    %s473 = scalar_lea.sflag [#allocation4], 1
    %474 = vsyncpa %s473, 1

</llo_original>
